<compile_context>
chip_gen: v7x
topology: tpu7x:2x2x1
jax: 0.10.0
libtpu: 0.0.40
codegen_flags: <defaults>
</compile_context>

<pallas_src>
import jax
import jax.numpy as jnp
from jax.experimental import pallas as pl
from jax.experimental.pallas import tpu as pltpu


def _model_kernel(x_ref, wb_ref, o_ref):
    # x_ref:  SMEM (4,) f32  == [x[0,0], x[0,1], x[1,0], x[1,1]]
    # wb_ref: SMEM (3,) f32  == [w[0,0], w[0,1], b[0]]
    # o_ref:  SMEM (1,) f32
    w0 = wb_ref[0]
    w1 = wb_ref[1]
    b = wb_ref[2]

    # Linear applied to rows 0 and 1 (the only rows the module ever reads).
    v1_0 = x_ref[0] * w0 + x_ref[1] * w1 + b
    v1_1 = x_ref[2] * w0 + x_ref[3] * w1 + b

    v2 = v1_0 - 4.0
    v3 = v1_1 - 4.0
    v4 = jnp.maximum(v2, v3)
    o_ref[0] = v1_0 * v1_1 * v4


_SMEM_SPEC = pl.BlockSpec(memory_space=pltpu.MemorySpace.SMEM)

_model_call = pl.pallas_call(
    _model_kernel,
    out_shape=jax.ShapeDtypeStruct((1,), jnp.float32),
    in_specs=[_SMEM_SPEC, _SMEM_SPEC],
    out_specs=_SMEM_SPEC,
    cost_estimate=pl.CostEstimate(flops=10, transcendentals=0, bytes_accessed=36),
)


def prepare_params(weight, bias):
    """One-time parameter prep: pack weight + bias into a single (3,) f32 operand."""
    w_flat = jnp.asarray(weight, jnp.float32).reshape(2)   # (2,)
    b_flat = jnp.asarray(bias, jnp.float32).reshape(1)     # (1,)
    return jnp.concatenate([w_flat, b_flat])                # (3,)


@jax.jit
def model_forward(x, wb):
    """x: (B, 2) with B >= 2; wb: (3,) f32 from prepare_params() -> (1,) f32.

    Only rows 0 and 1 of x are ever used; slicing stays inside the jit so the
    prep fuses into the same compiled launch as the Pallas custom call.
    """
    x2 = x[:2, :].astype(jnp.float32).reshape(4)             # (4,)
    return _model_call(x2, wb)                               # (1,)


def _reference(x, weight, bias):
    v1 = x.astype(jnp.float32) @ weight.T + bias             # (B, 1)
    v2 = v1[0] - 4.0
    v3 = v1[1] - 4.0
    v4 = jnp.maximum(v2, v3)
    return v1[0] * v1[1] * v4                                # (1,)


if __name__ == "__main__":
    key = jax.random.PRNGKey(0)
    kx, kw, kb = jax.random.split(key, 3)

    B, IN, OUT = 4, 2, 1
    x = jax.random.normal(kx, (B, IN), dtype=jnp.float32)

    # Deterministic parameter init, mimicking nn.Linear's U(-1/sqrt(in), 1/sqrt(in)).
    bound = 1.0 / jnp.sqrt(jnp.float32(IN))
    weight = jax.random.uniform(kw, (OUT, IN), jnp.float32, -bound, bound)
    bias = jax.random.uniform(kb, (OUT,), jnp.float32, -bound, bound)

    wb = prepare_params(weight, bias)

    out = jax.block_until_ready(model_forward(x, wb))
    ref = _reference(x, weight, bias)

    assert out.shape == (1,)
    assert jnp.allclose(out, ref, atol=1e-5, rtol=1e-5), (out, ref)
    print("KERNEL_OK")
</pallas_src>

<mosaic_0001>
module attributes {stable_mosaic.version = 11 : i64} {
  func.func @_model_kernel(%arg0: memref<4xf32, #tpu.memory_space<smem>>, %arg1: memref<3xf32, #tpu.memory_space<smem>>, %arg2: memref<1xf32, #tpu.memory_space<smem>>) attributes {dimension_semantics = [], scalar_prefetch = 0 : i64, scratch_operands = 0 : i64, tpu.core_type = #tpu.core_type<tc>} {
    %c0 = arith.constant 0 : index
    %0 = memref.load %arg1[%c0] : memref<3xf32, #tpu.memory_space<smem>>
    %c1 = arith.constant 1 : index
    %1 = memref.load %arg1[%c1] : memref<3xf32, #tpu.memory_space<smem>>
    %c2 = arith.constant 2 : index
    %2 = memref.load %arg1[%c2] : memref<3xf32, #tpu.memory_space<smem>>
    %c0_0 = arith.constant 0 : index
    %3 = memref.load %arg0[%c0_0] : memref<4xf32, #tpu.memory_space<smem>>
    %4 = arith.mulf %3, %0 : f32
    %c1_1 = arith.constant 1 : index
    %5 = memref.load %arg0[%c1_1] : memref<4xf32, #tpu.memory_space<smem>>
    %6 = arith.mulf %5, %1 : f32
    %7 = arith.addf %4, %6 : f32
    %8 = arith.addf %7, %2 : f32
    %c2_2 = arith.constant 2 : index
    %9 = memref.load %arg0[%c2_2] : memref<4xf32, #tpu.memory_space<smem>>
    %10 = arith.mulf %9, %0 : f32
    %c3 = arith.constant 3 : index
    %11 = memref.load %arg0[%c3] : memref<4xf32, #tpu.memory_space<smem>>
    %12 = arith.mulf %11, %1 : f32
    %13 = arith.addf %10, %12 : f32
    %14 = arith.addf %13, %2 : f32
    %cst = arith.constant 4.000000e+00 : f32
    %15 = arith.subf %8, %cst : f32
    %cst_3 = arith.constant 4.000000e+00 : f32
    %16 = arith.subf %14, %cst_3 : f32
    %17 = arith.maximumf %15, %16 : f32
    %18 = arith.mulf %8, %14 : f32
    %19 = arith.mulf %18, %17 : f32
    %c0_4 = arith.constant 0 : index
    %20 = memref.load %arg2[%c0_4] : memref<1xf32, #tpu.memory_space<smem>>
    memref.store %19, %arg2[%c0_4] : memref<1xf32, #tpu.memory_space<smem>>
    return
  }
}

</mosaic_0001>

<llo_original>
// kernel: model_forward.1
$region0: #{model_forward.1}
  #allocation0 [shape = 'u32[]', space=smem, size = 0x4, offset = 0x4, fixed_abs, tag = 'smem constant byte address 0x4 - core index']
  #allocation1 [shape = 'u32[144,128]{1,0:T(1,128)}', space=vmem, size = 0x12000, scoped, tag = 'internal scratch']
  %s0 = inlined_call_operand.vmem [shape: f32[4], index: 0, kind: input, shape index: {}]
  %s1 = inlined_call_operand.vmem [shape: f32[3], index: 1, kind: input, shape index: {}]
  %s2 = inlined_call_operand.hbm [shape: f32[1], index: 2, kind: output, shape index: {}]
  %s3 = sld [smem:[#allocation0]]
  $region26: #{model_forward.1} parent=0
    _
  %s5 = ssub.s32 1, %s3
  %s6 = scalar_select 0, %s5, %s3
  $region1: #{model_forward.1} parent=0
    #allocation2 [shape = 'u8[512]{0}', space=smem, size = 0x200, scoped, tag = 'input window, operand 0, single buffered']
    #allocation3 [shape = 's32[1]{0}', space=sflag, size = 0x4, scoped, tag = 'scoped memory for model_forward.1']
    #allocation4 [shape = 's32[1]{0}', space=sflag, size = 0x4, scoped, tag = 'scoped memory for model_forward.1']
    #allocation5 [shape = 'u8[512]{0}', space=smem, size = 0x200, scoped, tag = 'input window, operand 1, single buffered']
    #allocation6 [shape = 's32[1]{0}', space=sflag, size = 0x4, scoped, tag = 'scoped memory for model_forward.1']
    #allocation7 [shape = 'u8[512]{0}', space=smem, size = 0x200, scoped, tag = 'output window, operand 0, single buffered']
    %7 = vsyncpa [#allocation4], 0
    %8 = vsyncpa [#allocation6], 0
    %9 = vsyncpa [#allocation3], 0
    // Predicated region
    $region2: #{model_forward.1} parent=1 // pred_check
      _
    $region3: #{model_forward.1} parent=1 // pred_check_branch
      %11 = sbr.rel (0) target = $region5
    $region4: #{model_forward.1} parent=1 // pred_region
      %s13 = ssub.s32 16, 16
      %14 = vsyncadd [#allocation4], %s13
      %s16 = sshll.u32 %s0, 4
      %s17 = int_to_ptr.vmem [resolvable:$true] %s16
      %19 = dma.vmem_to_smem %s17, 16, [#allocation2], [#allocation4]
    $region5: #{model_forward.1} parent=1 // pred_fallthru
      _
    // Predicated region
    $region6: #{model_forward.1} parent=1 // pred_check
      _
    $region7: #{model_forward.1} parent=1 // pred_check_branch
      %21 = sbr.rel (0) target = $region9
    $region8: #{model_forward.1} parent=1 // pred_region
      %s23 = ssub.s32 16, 16
      %24 = vsyncadd [#allocation6], %s23
      %s26 = sshll.u32 %s1, 4
      %s27 = int_to_ptr.vmem [resolvable:$true] %s26
      %29 = dma.vmem_to_smem %s27, 16, [#allocation5], [#allocation6]
    $region9: #{model_forward.1} parent=1 // pred_fallthru
      _
    // Predicated region
    $region10: #{model_forward.1} parent=1 // pred_check
      _
    $region11: #{model_forward.1} parent=1 // pred_check_branch
      %31 = sbr.rel (0) target = $region13
    $region12: #{model_forward.1} parent=1 // pred_region
      %32 = dma.done [#allocation4], 16
    $region13: #{model_forward.1} parent=1 // pred_fallthru
      _
    // Predicated region
    $region14: #{model_forward.1} parent=1 // pred_check
      _
    $region15: #{model_forward.1} parent=1 // pred_check_branch
      %34 = sbr.rel (0) target = $region17
    $region16: #{model_forward.1} parent=1 // pred_region
      %35 = dma.done [#allocation6], 16
    $region17: #{model_forward.1} parent=1 // pred_fallthru
      _
    %36 = sfence
    %s37 = sld [smem:[#allocation5]]
    %s38 = sld [smem:[#allocation5 + $0x1]]
    %s39 = sld [smem:[#allocation5 + $0x2]]
    %s40 = sld [smem:[#allocation2]]
    %s41 = smul.f32 %s40, %s37
    %s42 = sld [smem:[#allocation2 + $0x1]]
    %s43 = smul.f32 %s42, %s38
    %s44 = sadd.f32 %s41, %s43
    %s45 = sadd.f32 %s44, %s39
    %s46 = sld [smem:[#allocation2 + $0x2]]
    %s47 = smul.f32 %s46, %s37
    %s48 = sld [smem:[#allocation2 + $0x3]]
    %s49 = smul.f32 %s48, %s38
    %s50 = sadd.f32 %s47, %s49
    %s51 = sadd.f32 %s50, %s39
    %s52 = ssub.f32 %s45, 4.0
    %s53 = ssub.f32 %s51, 4.0
    %s54 = smax.f32 %s52, %s53
    %s55 = smul.f32 %s45, %s51
    %s56 = smul.f32 %s55, %s54
    %s57 = scalar_lea.smem [#allocation7], 0
    %58 = sst [smem:[%s57]] %s56
    // Predicated region
    $region18: #{model_forward.1} parent=1 // pred_check
      _
    $region19: #{model_forward.1} parent=1 // pred_check_branch
      %60 = sbr.rel (0) target = $region21
    $region20: #{model_forward.1} parent=1 // pred_region
      %s62 = ssub.s32 16, 16
      %63 = vsyncadd [#allocation3], %s62
      %66 = dma.smem_to_hbm [#allocation7], 16, %s2, [#allocation3]
    $region21: #{model_forward.1} parent=1 // pred_fallthru
      _
    // Predicated region
    $region22: #{model_forward.1} parent=1 // pred_check
      _
    $region23: #{model_forward.1} parent=1 // pred_check_branch
      %68 = sbr.rel (0) target = $region25
    $region24: #{model_forward.1} parent=1 // pred_region
      %69 = dma.done [#allocation3], 16
    $region25: #{model_forward.1} parent=1 // pred_fallthru
      _
    %70 = sfence
    %71 = vsyncpa [#allocation3], 1
    %72 = vsyncpa [#allocation4], 1
    %73 = vsyncpa [#allocation6], 1

</llo_original>
